<compile_context>
chip_gen: v5e
topology: v5e:2x2
jax: 0.10.0
libtpu: 0.0.40
codegen_flags: <defaults>
</compile_context>

<pallas_src>
import jax
import jax.numpy as jnp
from jax.experimental import pallas as pl
from jax.experimental.pallas import tpu as pltpu

B = 2                 # batch (number of sequences)
C_IN = 4              # input_channels (conv H dimension)
T = 5                 # input_samples (conv W dimension == LSTM seq len)
C_CONV = 16           # conv output channels
HID = 64              # LSTM hidden size
NUM_CLASSES = 3
FEAT = C_CONV * C_IN  # 64 = LSTM input size
COLS = C_IN * 3 + 1   # im2col columns (+1 ones column for the conv bias)
BN_EPS = 1e-5
BLOCK_B = 8           # sublane-padded sequence-batch rows per grid block


# ----------------------------------------------------------------------------
# Pallas kernel: conv(im2col matmul) -> ELU -> (BN folded) -> BiLSTM -> FC
# ----------------------------------------------------------------------------
def convbilstm_kernel(xcol_ref, wpatch_ref, wih_ref, whh_ref, bg_ref,
                      wfc_ref, bfc_ref, out_ref):
    H = whh_ref.shape[0]           # hidden size (W_hh is transposed: (H, 4H))
    G = whh_ref.shape[1]           # 4H
    Bk = out_ref.shape[0]          # 8 (sublane-padded batch rows per block)
    Tk = xcol_ref.shape[0] // Bk   # sequence length

    # ---- Conv2d(1,16,(1,3),pad=(0,1)) as one im2col matmul (bf16 x bf16 ->
    #      f32 accumulate). Conv bias is folded into the last row of wpatch
    #      (xcol's last column is all-ones). ----
    conv = jnp.dot(xcol_ref[...], wpatch_ref[...],
                   preferred_element_type=jnp.float32)
    # ---- ELU (alpha=1.0), f32 ----
    act = jnp.where(conv > 0.0, conv, jnp.exp(jnp.minimum(conv, 0.0)) - 1.0)
    # TODO(synk): Dropout(0.3) is identity at inference; no RNG masking here.

    # ---- Hoisted LSTM input projection for BOTH directions.
    #      BatchNorm (eval) is folded into wih_ref / bg_ref at pack time. ----
    xproj = jnp.dot(act.astype(wih_ref.dtype), wih_ref[...],
                    preferred_element_type=jnp.float32) + bg_ref[...]
    # xproj: (T*Bk, 8H); lanes [0:4H) = forward gates, [4H:8H) = backward.
    # Within each 4H block the gate order is [i, f, o, g] (packed that way).

    def sigmoid(v):
        # single tanh on the EUP; the 0.5 scale/shift co-issue on VALU
        return 0.5 * jnp.tanh(0.5 * v) + 0.5

    def cell(g, c):
        sig = sigmoid(g[:, 0:3 * H])          # i, f, o only (no dead g lanes)
        g_g = jnp.tanh(g[:, 3 * H:4 * H])
        c_new = sig[:, H:2 * H] * c + sig[:, 0:H] * g_g
        h_new = sig[:, 2 * H:3 * H] * jnp.tanh(c_new)
        return h_new, c_new

    whh_f = whh_ref[...]                      # (H, 4H) bf16

    # ---- Forward direction: T unrolled steps, keep the final hidden. ----
    h_f = jnp.zeros((Bk, H), jnp.float32)
    c_f = jnp.zeros((Bk, H), jnp.float32)
    for t in range(Tk):                       # static unroll, T small
        g = xproj[t * Bk:(t + 1) * Bk, 0:G]
        if t > 0:                             # at t == 0 h_f == 0 -> skip matmul
            g = g + jnp.dot(h_f.astype(whh_f.dtype), whh_f,
                            preferred_element_type=jnp.float32)
        h_f, c_f = cell(g, c_f)

    # ---- Backward direction: output[:, -1, H:] equals the backward cell's
    #      FIRST step (x_{T-1}, zero initial state) -> recurrent term is 0,
    #      so no W_hh_b matmul (and no W_hh_b operand) is needed. ----
    g_b = xproj[(Tk - 1) * Bk:Tk * Bk, G:2 * G]
    h_b, _ = cell(g_b, jnp.zeros((Bk, H), jnp.float32))

    # ---- Final Linear(2H -> num_classes), split to avoid in-kernel concat ----
    out_ref[...] = (
        jnp.dot(h_f.astype(wfc_ref.dtype), wfc_ref[0],
                preferred_element_type=jnp.float32)
        + jnp.dot(h_b.astype(wfc_ref.dtype), wfc_ref[1],
                  preferred_element_type=jnp.float32)
        + bfc_ref[...])


# ----------------------------------------------------------------------------
# One-time parameter repacking (all jnp ops, jit/trace friendly).
# ----------------------------------------------------------------------------
def pack_params(p):
    # Gate-column permutation: PyTorch order [i, f, g, o] -> [i, f, o, g]
    gate_idx = jnp.concatenate([jnp.arange(0, 2 * HID),
                                jnp.arange(3 * HID, 4 * HID),
                                jnp.arange(2 * HID, 3 * HID)])

    w = p["conv_w"][:, 0, 0, :].astype(jnp.float32)                   # (16, 3)
    # wpatch[h*3 + k, c*C_IN + h] = w[c, k]
    eye_h = jnp.eye(C_IN, dtype=jnp.float32)
    wpatch = jnp.einsum("ck,hg->hkcg", w, eye_h).reshape(C_IN * 3, FEAT)
    cbias = jnp.repeat(p["conv_b"].astype(jnp.float32), C_IN)         # (FEAT,)
    wpatch_aug = jnp.concatenate([wpatch, cbias[None, :]],
                                 axis=0).astype(jnp.bfloat16)         # (13, 64)

    # Fold BatchNorm2d (eval mode) downstream into the LSTM input projection.
    bn_scale = p["bn_gamma"] / jnp.sqrt(p["bn_var"] + BN_EPS)         # (16,)
    bn_shift = p["bn_beta"] - p["bn_mean"] * bn_scale
    scale_f = jnp.repeat(bn_scale, C_IN)                              # (FEAT,)
    shift_f = jnp.repeat(bn_shift, C_IN)

    wih_f = p["w_ih_f"].T.astype(jnp.float32)                         # (FEAT, 4H)
    wih_b = p["w_ih_b"].T.astype(jnp.float32)
    bg_f = (p["b_ih_f"] + p["b_hh_f"] + shift_f @ wih_f)[gate_idx]    # (4H,)
    bg_b = (p["b_ih_b"] + p["b_hh_b"] + shift_f @ wih_b)[gate_idx]

    wih_f_p = wih_f[:, gate_idx]
    wih_b_p = wih_b[:, gate_idx]
    wih_cat = (jnp.concatenate([wih_f_p, wih_b_p], axis=1)
               * scale_f[:, None]).astype(jnp.bfloat16)               # (FEAT, 8H)
    bg_cat = jnp.concatenate([bg_f, bg_b])[None, :].astype(jnp.float32)  # (1, 8H)

    whh_f = p["w_hh_f"].T.astype(jnp.float32)[:, gate_idx].astype(jnp.bfloat16)
    # NOTE: w_hh_b is mathematically unused in this forward pass (it would
    # multiply the backward direction's zero initial hidden state).

    wfc_t = p["fc_w"].T.astype(jnp.float32)                           # (2H, classes)
    wfc_stack = jnp.stack([wfc_t[:HID], wfc_t[HID:]],
                          axis=0).astype(jnp.bfloat16)                # (2, H, classes)
    bfc = p["fc_b"][None, :].astype(jnp.float32)                      # (1, classes)

    return {"wpatch_aug": wpatch_aug, "wih_cat": wih_cat, "whh_f": whh_f,
            "bg_cat": bg_cat, "wfc_stack": wfc_stack, "bfc": bfc}


# ----------------------------------------------------------------------------
# Forward: im2col glue + gridded pallas_call (weights VMEM-resident).
# ----------------------------------------------------------------------------
@jax.jit
def conv_bilstm_forward(x, packed):
    # x: NCHW (B, 1, C_IN, T), float32
    Bx = x.shape[0]
    n_blocks = pl.cdiv(Bx, BLOCK_B)
    Bp = n_blocks * BLOCK_B                                           # padded batch

    x2 = x[:, 0, :, :].astype(jnp.float32)                            # (B, C_IN, T)
    x2 = jnp.pad(x2, ((0, Bp - Bx), (0, 0), (0, 0)))                  # sublane pad B->8k
    x_pad = jnp.pad(x2, ((0, 0), (0, 0), (1, 1)))                     # pad W by 1
    # im2col: patches[t, b, h, k] = x_pad[b, h, t + k]
    patches = jnp.stack([x_pad[:, :, t:t + 3] for t in range(T)], axis=0)
    xcol = patches.reshape(T, n_blocks, BLOCK_B, C_IN * 3)
    xcol = jnp.transpose(xcol, (1, 0, 2, 3)).reshape(n_blocks, T * BLOCK_B,
                                                     C_IN * 3)
    xcol_aug = jnp.concatenate(
        [xcol, jnp.ones((n_blocks, T * BLOCK_B, 1), jnp.float32)],
        axis=2).astype(jnp.bfloat16)                                  # ones col -> conv bias

    # Weight operands: full-extent blocks pinned to block (0,...) every grid
    # step -> stay VMEM-resident across the (parallel) sequence-batch grid.
    w_spec = lambda a: pl.BlockSpec(a.shape, lambda i: (0,) * a.ndim)

    out = pl.pallas_call(
        convbilstm_kernel,
        out_shape=jax.ShapeDtypeStruct((n_blocks, BLOCK_B, NUM_CLASSES),
                                       jnp.float32),
        grid=(n_blocks,),
        in_specs=[
            pl.BlockSpec((None, T * BLOCK_B, COLS), lambda i: (i, 0, 0)),
            w_spec(packed["wpatch_aug"]),
            w_spec(packed["wih_cat"]),
            w_spec(packed["whh_f"]),
            w_spec(packed["bg_cat"]),
            w_spec(packed["wfc_stack"]),
            w_spec(packed["bfc"]),
        ],
        out_specs=pl.BlockSpec((None, BLOCK_B, NUM_CLASSES),
                               lambda i: (i, 0, 0)),
        compiler_params=pltpu.CompilerParams(
            dimension_semantics=("parallel",)),
    )(xcol_aug, packed["wpatch_aug"], packed["wih_cat"], packed["whh_f"],
      packed["bg_cat"], packed["wfc_stack"], packed["bfc"])
    return out.reshape(n_blocks * BLOCK_B, NUM_CLASSES)[:Bx]


# ----------------------------------------------------------------------------
# Pure-JAX reference (mirrors the PyTorch forward, eval mode, f32)
# ----------------------------------------------------------------------------
def reference_forward(x, p):
    Bx = x.shape[0]
    w = p["conv_w"][:, 0, 0, :]                                       # (16, 3)
    x_pad = jnp.pad(x, ((0, 0), (0, 0), (0, 0), (1, 1)))
    patches = jnp.stack([x_pad[:, 0, :, k:k + T] for k in range(3)], axis=-1)
    y = jnp.einsum("bhtk,ck->bcht", patches, w) + p["conv_b"][None, :, None, None]
    y = jnp.where(y > 0.0, y, jnp.exp(jnp.minimum(y, 0.0)) - 1.0)
    y = ((y - p["bn_mean"][None, :, None, None])
         / jnp.sqrt(p["bn_var"][None, :, None, None] + BN_EPS)
         * p["bn_gamma"][None, :, None, None] + p["bn_beta"][None, :, None, None])
    seq = jnp.transpose(y, (0, 3, 1, 2)).reshape(Bx, T, FEAT)

    def cell(x_t, h, c, wih, whh, bih, bhh):
        g = x_t @ wih.T + h @ whh.T + bih + bhh
        i = jax.nn.sigmoid(g[:, :HID])
        f = jax.nn.sigmoid(g[:, HID:2 * HID])
        gg = jnp.tanh(g[:, 2 * HID:3 * HID])
        o = jax.nn.sigmoid(g[:, 3 * HID:])
        c = f * c + i * gg
        h = o * jnp.tanh(c)
        return h, c

    h = jnp.zeros((Bx, HID)); c = jnp.zeros((Bx, HID))
    for t in range(T):
        h, c = cell(seq[:, t], h, c, p["w_ih_f"], p["w_hh_f"],
                    p["b_ih_f"], p["b_hh_f"])
    h_fwd_last = h

    h = jnp.zeros((Bx, HID)); c = jnp.zeros((Bx, HID))
    h_bwd_last = None
    for t in range(T - 1, -1, -1):
        h, c = cell(seq[:, t], h, c, p["w_ih_b"], p["w_hh_b"],
                    p["b_ih_b"], p["b_hh_b"])
        if t == T - 1:
            h_bwd_last = h

    out = jnp.concatenate([h_fwd_last, h_bwd_last], axis=1) @ p["fc_w"].T + p["fc_b"]
    return out


def init_params(key):
    ks = jax.random.split(key, 16)
    s_lstm = 1.0 / (HID ** 0.5)
    s_fc = 1.0 / ((2 * HID) ** 0.5)
    u = lambda k, shp, s: jax.random.uniform(k, shp, jnp.float32, -s, s)
    p = {
        "conv_w": jax.random.normal(ks[0], (C_CONV, 1, 1, 3), jnp.float32) * 0.3,
        "conv_b": jax.random.normal(ks[1], (C_CONV,), jnp.float32) * 0.1,
        "bn_gamma": 1.0 + 0.1 * jax.random.normal(ks[2], (C_CONV,), jnp.float32),
        "bn_beta": 0.1 * jax.random.normal(ks[3], (C_CONV,), jnp.float32),
        "bn_mean": 0.1 * jax.random.normal(ks[4], (C_CONV,), jnp.float32),
        "bn_var": 0.5 + 0.5 * jnp.abs(jax.random.normal(ks[5], (C_CONV,), jnp.float32)),
        "w_ih_f": u(ks[6], (4 * HID, FEAT), s_lstm),
        "w_hh_f": u(ks[7], (4 * HID, HID), s_lstm),
        "b_ih_f": u(ks[8], (4 * HID,), s_lstm),
        "b_hh_f": u(ks[9], (4 * HID,), s_lstm),
        "w_ih_b": u(ks[10], (4 * HID, FEAT), s_lstm),
        "w_hh_b": u(ks[11], (4 * HID, HID), s_lstm),
        "b_ih_b": u(ks[12], (4 * HID,), s_lstm),
        "b_hh_b": u(ks[13], (4 * HID,), s_lstm),
        "fc_w": u(ks[14], (NUM_CLASSES, 2 * HID), s_fc),
        "fc_b": u(ks[15], (NUM_CLASSES,), s_fc),
    }
    return p


if __name__ == "__main__":
    key = jax.random.PRNGKey(0)
    kx, kp = jax.random.split(key)
    x = jax.random.normal(kx, (B, 1, C_IN, T), jnp.float32)   # NCHW like PyTorch
    params = init_params(kp)

    packed = pack_params(params)          # one-time repack, outside per-call path
    out = jax.block_until_ready(conv_bilstm_forward(x, packed))

    ref = jax.block_until_ready(reference_forward(x, params))
    assert out.shape == (B, NUM_CLASSES)
    assert jnp.allclose(out, ref, rtol=2e-2, atol=2e-2), (out, ref)
    print("KERNEL_OK")
</pallas_src>

<mosaic_0001>
module attributes {stable_mosaic.version = 11 : i64} {
  func.func @convbilstm_kernel(%arg0: i32, %arg1: memref<1x40x13xbf16, #tpu.memory_space<vmem>>, %arg2: memref<13x64xbf16, #tpu.memory_space<vmem>>, %arg3: memref<64x512xbf16, #tpu.memory_space<vmem>>, %arg4: memref<64x256xbf16, #tpu.memory_space<vmem>>, %arg5: memref<1x512xf32, #tpu.memory_space<vmem>>, %arg6: memref<2x64x3xbf16, #tpu.memory_space<vmem>>, %arg7: memref<1x3xf32, #tpu.memory_space<vmem>>, %arg8: memref<1x8x3xf32, #tpu.memory_space<vmem>>) attributes {dimension_semantics = [#tpu.dimension_semantics<parallel>], iteration_bounds = array<i64: 1>, scalar_prefetch = 0 : i64, scratch_operands = 0 : i64, tpu.core_type = #tpu.core_type<tc>, window_params = [{transform_indices = @transform_0, window_bounds = array<i64: 1, 40, 13>}, {pipeline_mode = #tpu.pipeline_mode<synchronous>, transform_indices = @transform_1, window_bounds = array<i64: 13, 64>}, {pipeline_mode = #tpu.pipeline_mode<synchronous>, transform_indices = @transform_2, window_bounds = array<i64: 64, 512>}, {pipeline_mode = #tpu.pipeline_mode<synchronous>, transform_indices = @transform_3, window_bounds = array<i64: 64, 256>}, {pipeline_mode = #tpu.pipeline_mode<synchronous>, transform_indices = @transform_4, window_bounds = array<i64: 1, 512>}, {pipeline_mode = #tpu.pipeline_mode<synchronous>, transform_indices = @transform_5, window_bounds = array<i64: 2, 64, 3>}, {pipeline_mode = #tpu.pipeline_mode<synchronous>, transform_indices = @transform_6, window_bounds = array<i64: 1, 3>}, {transform_indices = @transform_7, window_bounds = array<i64: 1, 8, 3>}]} {
    %c0 = arith.constant 0 : index
    %c0_0 = arith.constant 0 : index
    %c0_1 = arith.constant 0 : index
    %0 = vector.load %arg1[%c0, %c0_0, %c0_1] : memref<1x40x13xbf16, #tpu.memory_space<vmem>>, vector<1x40x13xbf16>
    %1 = vector.shape_cast %0 : vector<1x40x13xbf16> to vector<40x13xbf16>
    %c0_2 = arith.constant 0 : index
    %c0_3 = arith.constant 0 : index
    %2 = vector.load %arg2[%c0_2, %c0_3] : memref<13x64xbf16, #tpu.memory_space<vmem>>, vector<13x64xbf16>
    %cst = arith.constant dense<0.000000e+00> : vector<40x64xf32>
    %3 = tpu.matmul %1, %2, %cst {dimension_numbers = #tpu.dot_dimension_numbers<[1], [0], [0], [1], [0, 0, 1, 1], [], []>} : vector<40x13xbf16>, vector<13x64xbf16>, vector<40x64xf32> -> vector<40x64xf32>
    %cst_4 = arith.constant 0.000000e+00 : f32
    %4 = vector.broadcast %cst_4 : f32 to vector<40x64xf32>
    %5 = arith.cmpf ogt, %3, %4 : vector<40x64xf32>
    %cst_5 = arith.constant 0.000000e+00 : f32
    %6 = vector.broadcast %cst_5 : f32 to vector<40x64xf32>
    %7 = arith.minimumf %3, %6 : vector<40x64xf32>
    %8 = math.exp %7 : vector<40x64xf32>
    %cst_6 = arith.constant 1.000000e+00 : f32
    %9 = vector.broadcast %cst_6 : f32 to vector<40x64xf32>
    %10 = arith.subf %8, %9 : vector<40x64xf32>
    %11 = arith.select %5, %3, %10 : vector<40x64xi1>, vector<40x64xf32>
    %12 = arith.truncf %11 : vector<40x64xf32> to vector<40x64xbf16>
    %c0_7 = arith.constant 0 : index
    %c0_8 = arith.constant 0 : index
    %13 = vector.load %arg3[%c0_7, %c0_8] : memref<64x512xbf16, #tpu.memory_space<vmem>>, vector<64x512xbf16>
    %cst_9 = arith.constant dense<0.000000e+00> : vector<40x512xf32>
    %14 = tpu.matmul %12, %13, %cst_9 {dimension_numbers = #tpu.dot_dimension_numbers<[1], [0], [0], [1], [0, 0, 1, 1], [], []>} : vector<40x64xbf16>, vector<64x512xbf16>, vector<40x512xf32> -> vector<40x512xf32>
    %c0_10 = arith.constant 0 : index
    %c0_11 = arith.constant 0 : index
    %15 = vector.load %arg5[%c0_10, %c0_11] : memref<1x512xf32, #tpu.memory_space<vmem>>, vector<1x512xf32>
    %16 = vector.broadcast %15 : vector<1x512xf32> to vector<40x512xf32>
    %17 = arith.addf %14, %16 : vector<40x512xf32>
    %c0_12 = arith.constant 0 : index
    %c0_13 = arith.constant 0 : index
    %18 = vector.load %arg4[%c0_12, %c0_13] : memref<64x256xbf16, #tpu.memory_space<vmem>>, vector<64x256xbf16>
    %cst_14 = arith.constant 0.000000e+00 : f32
    %19 = vector.broadcast %cst_14 : f32 to vector<8x64xf32>
    %20 = vector.extract_strided_slice %17 {offsets = [0, 0], sizes = [8, 256], strides = [1, 1]} : vector<40x512xf32> to vector<8x256xf32>
    %21 = vector.extract_strided_slice %20 {offsets = [0, 0], sizes = [8, 192], strides = [1, 1]} : vector<8x256xf32> to vector<8x192xf32>
    %cst_15 = arith.constant 5.000000e-01 : f32
    %22 = vector.broadcast %cst_15 : f32 to vector<8x192xf32>
    %23 = arith.mulf %22, %21 : vector<8x192xf32>
    %24 = math.tanh %23 : vector<8x192xf32>
    %cst_16 = arith.constant 5.000000e-01 : f32
    %25 = vector.broadcast %cst_16 : f32 to vector<8x192xf32>
    %26 = arith.mulf %25, %24 : vector<8x192xf32>
    %cst_17 = arith.constant 5.000000e-01 : f32
    %27 = vector.broadcast %cst_17 : f32 to vector<8x192xf32>
    %28 = arith.addf %26, %27 : vector<8x192xf32>
    %29 = vector.extract_strided_slice %20 {offsets = [0, 192], sizes = [8, 64], strides = [1, 1]} : vector<8x256xf32> to vector<8x64xf32>
    %30 = math.tanh %29 : vector<8x64xf32>
    %31 = vector.extract_strided_slice %28 {offsets = [0, 64], sizes = [8, 64], strides = [1, 1]} : vector<8x192xf32> to vector<8x64xf32>
    %32 = arith.mulf %31, %19 : vector<8x64xf32>
    %33 = vector.extract_strided_slice %28 {offsets = [0, 0], sizes = [8, 64], strides = [1, 1]} : vector<8x192xf32> to vector<8x64xf32>
    %34 = arith.mulf %33, %30 : vector<8x64xf32>
    %35 = arith.addf %32, %34 : vector<8x64xf32>
    %36 = vector.extract_strided_slice %28 {offsets = [0, 128], sizes = [8, 64], strides = [1, 1]} : vector<8x192xf32> to vector<8x64xf32>
    %37 = math.tanh %35 : vector<8x64xf32>
    %38 = arith.mulf %36, %37 : vector<8x64xf32>
    %39 = vector.extract_strided_slice %17 {offsets = [8, 0], sizes = [8, 256], strides = [1, 1]} : vector<40x512xf32> to vector<8x256xf32>
    %40 = arith.truncf %38 : vector<8x64xf32> to vector<8x64xbf16>
    %cst_18 = arith.constant dense<0.000000e+00> : vector<8x256xf32>
    %41 = tpu.matmul %40, %18, %cst_18 {dimension_numbers = #tpu.dot_dimension_numbers<[1], [0], [0], [1], [0, 0, 1, 1], [], []>} : vector<8x64xbf16>, vector<64x256xbf16>, vector<8x256xf32> -> vector<8x256xf32>
    %42 = arith.addf %39, %41 : vector<8x256xf32>
    %43 = vector.extract_strided_slice %42 {offsets = [0, 0], sizes = [8, 192], strides = [1, 1]} : vector<8x256xf32> to vector<8x192xf32>
    %cst_19 = arith.constant 5.000000e-01 : f32
    %44 = vector.broadcast %cst_19 : f32 to vector<8x192xf32>
    %45 = arith.mulf %44, %43 : vector<8x192xf32>
    %46 = math.tanh %45 : vector<8x192xf32>
    %cst_20 = arith.constant 5.000000e-01 : f32
    %47 = vector.broadcast %cst_20 : f32 to vector<8x192xf32>
    %48 = arith.mulf %47, %46 : vector<8x192xf32>
    %cst_21 = arith.constant 5.000000e-01 : f32
    %49 = vector.broadcast %cst_21 : f32 to vector<8x192xf32>
    %50 = arith.addf %48, %49 : vector<8x192xf32>
    %51 = vector.extract_strided_slice %42 {offsets = [0, 192], sizes = [8, 64], strides = [1, 1]} : vector<8x256xf32> to vector<8x64xf32>
    %52 = math.tanh %51 : vector<8x64xf32>
    %53 = vector.extract_strided_slice %50 {offsets = [0, 64], sizes = [8, 64], strides = [1, 1]} : vector<8x192xf32> to vector<8x64xf32>
    %54 = arith.mulf %53, %35 : vector<8x64xf32>
    %55 = vector.extract_strided_slice %50 {offsets = [0, 0], sizes = [8, 64], strides = [1, 1]} : vector<8x192xf32> to vector<8x64xf32>
    %56 = arith.mulf %55, %52 : vector<8x64xf32>
    %57 = arith.addf %54, %56 : vector<8x64xf32>
    %58 = vector.extract_strided_slice %50 {offsets = [0, 128], sizes = [8, 64], strides = [1, 1]} : vector<8x192xf32> to vector<8x64xf32>
    %59 = math.tanh %57 : vector<8x64xf32>
    %60 = arith.mulf %58, %59 : vector<8x64xf32>
    %61 = vector.extract_strided_slice %17 {offsets = [16, 0], sizes = [8, 256], strides = [1, 1]} : vector<40x512xf32> to vector<8x256xf32>
    %62 = arith.truncf %60 : vector<8x64xf32> to vector<8x64xbf16>
    %cst_22 = arith.constant dense<0.000000e+00> : vector<8x256xf32>
    %63 = tpu.matmul %62, %18, %cst_22 {dimension_numbers = #tpu.dot_dimension_numbers<[1], [0], [0], [1], [0, 0, 1, 1], [], []>} : vector<8x64xbf16>, vector<64x256xbf16>, vector<8x256xf32> -> vector<8x256xf32>
    %64 = arith.addf %61, %63 : vector<8x256xf32>
    %65 = vector.extract_strided_slice %64 {offsets = [0, 0], sizes = [8, 192], strides = [1, 1]} : vector<8x256xf32> to vector<8x192xf32>
    %cst_23 = arith.constant 5.000000e-01 : f32
    %66 = vector.broadcast %cst_23 : f32 to vector<8x192xf32>
    %67 = arith.mulf %66, %65 : vector<8x192xf32>
    %68 = math.tanh %67 : vector<8x192xf32>
    %cst_24 = arith.constant 5.000000e-01 : f32
    %69 = vector.broadcast %cst_24 : f32 to vector<8x192xf32>
    %70 = arith.mulf %69, %68 : vector<8x192xf32>
    %cst_25 = arith.constant 5.000000e-01 : f32
    %71 = vector.broadcast %cst_25 : f32 to vector<8x192xf32>
    %72 = arith.addf %70, %71 : vector<8x192xf32>
    %73 = vector.extract_strided_slice %64 {offsets = [0, 192], sizes = [8, 64], strides = [1, 1]} : vector<8x256xf32> to vector<8x64xf32>
    %74 = math.tanh %73 : vector<8x64xf32>
    %75 = vector.extract_strided_slice %72 {offsets = [0, 64], sizes = [8, 64], strides = [1, 1]} : vector<8x192xf32> to vector<8x64xf32>
    %76 = arith.mulf %75, %57 : vector<8x64xf32>
    %77 = vector.extract_strided_slice %72 {offsets = [0, 0], sizes = [8, 64], strides = [1, 1]} : vector<8x192xf32> to vector<8x64xf32>
    %78 = arith.mulf %77, %74 : vector<8x64xf32>
    %79 = arith.addf %76, %78 : vector<8x64xf32>
    %80 = vector.extract_strided_slice %72 {offsets = [0, 128], sizes = [8, 64], strides = [1, 1]} : vector<8x192xf32> to vector<8x64xf32>
    %81 = math.tanh %79 : vector<8x64xf32>
    %82 = arith.mulf %80, %81 : vector<8x64xf32>
    %83 = vector.extract_strided_slice %17 {offsets = [24, 0], sizes = [8, 256], strides = [1, 1]} : vector<40x512xf32> to vector<8x256xf32>
    %84 = arith.truncf %82 : vector<8x64xf32> to vector<8x64xbf16>
    %cst_26 = arith.constant dense<0.000000e+00> : vector<8x256xf32>
    %85 = tpu.matmul %84, %18, %cst_26 {dimension_numbers = #tpu.dot_dimension_numbers<[1], [0], [0], [1], [0, 0, 1, 1], [], []>} : vector<8x64xbf16>, vector<64x256xbf16>, vector<8x256xf32> -> vector<8x256xf32>
    %86 = arith.addf %83, %85 : vector<8x256xf32>
    %87 = vector.extract_strided_slice %86 {offsets = [0, 0], sizes = [8, 192], strides = [1, 1]} : vector<8x256xf32> to vector<8x192xf32>
    %cst_27 = arith.constant 5.000000e-01 : f32
    %88 = vector.broadcast %cst_27 : f32 to vector<8x192xf32>
    %89 = arith.mulf %88, %87 : vector<8x192xf32>
    %90 = math.tanh %89 : vector<8x192xf32>
    %cst_28 = arith.constant 5.000000e-01 : f32
    %91 = vector.broadcast %cst_28 : f32 to vector<8x192xf32>
    %92 = arith.mulf %91, %90 : vector<8x192xf32>
    %cst_29 = arith.constant 5.000000e-01 : f32
    %93 = vector.broadcast %cst_29 : f32 to vector<8x192xf32>
    %94 = arith.addf %92, %93 : vector<8x192xf32>
    %95 = vector.extract_strided_slice %86 {offsets = [0, 192], sizes = [8, 64], strides = [1, 1]} : vector<8x256xf32> to vector<8x64xf32>
    %96 = math.tanh %95 : vector<8x64xf32>
    %97 = vector.extract_strided_slice %94 {offsets = [0, 64], sizes = [8, 64], strides = [1, 1]} : vector<8x192xf32> to vector<8x64xf32>
    %98 = arith.mulf %97, %79 : vector<8x64xf32>
    %99 = vector.extract_strided_slice %94 {offsets = [0, 0], sizes = [8, 64], strides = [1, 1]} : vector<8x192xf32> to vector<8x64xf32>
    %100 = arith.mulf %99, %96 : vector<8x64xf32>
    %101 = arith.addf %98, %100 : vector<8x64xf32>
    %102 = vector.extract_strided_slice %94 {offsets = [0, 128], sizes = [8, 64], strides = [1, 1]} : vector<8x192xf32> to vector<8x64xf32>
    %103 = math.tanh %101 : vector<8x64xf32>
    %104 = arith.mulf %102, %103 : vector<8x64xf32>
    %105 = vector.extract_strided_slice %17 {offsets = [32, 0], sizes = [8, 256], strides = [1, 1]} : vector<40x512xf32> to vector<8x256xf32>
    %106 = arith.truncf %104 : vector<8x64xf32> to vector<8x64xbf16>
    %cst_30 = arith.constant dense<0.000000e+00> : vector<8x256xf32>
    %107 = tpu.matmul %106, %18, %cst_30 {dimension_numbers = #tpu.dot_dimension_numbers<[1], [0], [0], [1], [0, 0, 1, 1], [], []>} : vector<8x64xbf16>, vector<64x256xbf16>, vector<8x256xf32> -> vector<8x256xf32>
    %108 = arith.addf %105, %107 : vector<8x256xf32>
    %109 = vector.extract_strided_slice %108 {offsets = [0, 0], sizes = [8, 192], strides = [1, 1]} : vector<8x256xf32> to vector<8x192xf32>
    %cst_31 = arith.constant 5.000000e-01 : f32
    %110 = vector.broadcast %cst_31 : f32 to vector<8x192xf32>
    %111 = arith.mulf %110, %109 : vector<8x192xf32>
    %112 = math.tanh %111 : vector<8x192xf32>
    %cst_32 = arith.constant 5.000000e-01 : f32
    %113 = vector.broadcast %cst_32 : f32 to vector<8x192xf32>
    %114 = arith.mulf %113, %112 : vector<8x192xf32>
    %cst_33 = arith.constant 5.000000e-01 : f32
    %115 = vector.broadcast %cst_33 : f32 to vector<8x192xf32>
    %116 = arith.addf %114, %115 : vector<8x192xf32>
    %117 = vector.extract_strided_slice %108 {offsets = [0, 192], sizes = [8, 64], strides = [1, 1]} : vector<8x256xf32> to vector<8x64xf32>
    %118 = math.tanh %117 : vector<8x64xf32>
    %119 = vector.extract_strided_slice %116 {offsets = [0, 64], sizes = [8, 64], strides = [1, 1]} : vector<8x192xf32> to vector<8x64xf32>
    %120 = arith.mulf %119, %101 : vector<8x64xf32>
    %121 = vector.extract_strided_slice %116 {offsets = [0, 0], sizes = [8, 64], strides = [1, 1]} : vector<8x192xf32> to vector<8x64xf32>
    %122 = arith.mulf %121, %118 : vector<8x64xf32>
    %123 = arith.addf %120, %122 : vector<8x64xf32>
    %124 = vector.extract_strided_slice %116 {offsets = [0, 128], sizes = [8, 64], strides = [1, 1]} : vector<8x192xf32> to vector<8x64xf32>
    %125 = math.tanh %123 : vector<8x64xf32>
    %126 = arith.mulf %124, %125 : vector<8x64xf32>
    %127 = vector.extract_strided_slice %17 {offsets = [32, 256], sizes = [8, 256], strides = [1, 1]} : vector<40x512xf32> to vector<8x256xf32>
    %cst_34 = arith.constant 0.000000e+00 : f32
    %128 = vector.broadcast %cst_34 : f32 to vector<8x64xf32>
    %129 = vector.extract_strided_slice %127 {offsets = [0, 0], sizes = [8, 192], strides = [1, 1]} : vector<8x256xf32> to vector<8x192xf32>
    %cst_35 = arith.constant 5.000000e-01 : f32
    %130 = vector.broadcast %cst_35 : f32 to vector<8x192xf32>
    %131 = arith.mulf %130, %129 : vector<8x192xf32>
    %132 = math.tanh %131 : vector<8x192xf32>
    %cst_36 = arith.constant 5.000000e-01 : f32
    %133 = vector.broadcast %cst_36 : f32 to vector<8x192xf32>
    %134 = arith.mulf %133, %132 : vector<8x192xf32>
    %cst_37 = arith.constant 5.000000e-01 : f32
    %135 = vector.broadcast %cst_37 : f32 to vector<8x192xf32>
    %136 = arith.addf %134, %135 : vector<8x192xf32>
    %137 = vector.extract_strided_slice %127 {offsets = [0, 192], sizes = [8, 64], strides = [1, 1]} : vector<8x256xf32> to vector<8x64xf32>
    %138 = math.tanh %137 : vector<8x64xf32>
    %139 = vector.extract_strided_slice %136 {offsets = [0, 64], sizes = [8, 64], strides = [1, 1]} : vector<8x192xf32> to vector<8x64xf32>
    %140 = arith.mulf %139, %128 : vector<8x64xf32>
    %141 = vector.extract_strided_slice %136 {offsets = [0, 0], sizes = [8, 64], strides = [1, 1]} : vector<8x192xf32> to vector<8x64xf32>
    %142 = arith.mulf %141, %138 : vector<8x64xf32>
    %143 = arith.addf %140, %142 : vector<8x64xf32>
    %144 = vector.extract_strided_slice %136 {offsets = [0, 128], sizes = [8, 64], strides = [1, 1]} : vector<8x192xf32> to vector<8x64xf32>
    %145 = math.tanh %143 : vector<8x64xf32>
    %146 = arith.mulf %144, %145 : vector<8x64xf32>
    %147 = arith.truncf %126 : vector<8x64xf32> to vector<8x64xbf16>
    %c0_38 = arith.constant 0 : index
    %c0_39 = arith.constant 0 : index
    %c0_40 = arith.constant 0 : index
    %148 = vector.load %arg6[%c0_38, %c0_39, %c0_40] : memref<2x64x3xbf16, #tpu.memory_space<vmem>>, vector<1x64x3xbf16>
    %149 = vector.shape_cast %148 : vector<1x64x3xbf16> to vector<64x3xbf16>
    %cst_41 = arith.constant dense<0.000000e+00> : vector<8x3xf32>
    %150 = tpu.matmul %147, %149, %cst_41 {dimension_numbers = #tpu.dot_dimension_numbers<[1], [0], [0], [1], [0, 0, 1, 1], [], []>} : vector<8x64xbf16>, vector<64x3xbf16>, vector<8x3xf32> -> vector<8x3xf32>
    %151 = arith.truncf %146 : vector<8x64xf32> to vector<8x64xbf16>
    %c1 = arith.constant 1 : index
    %c0_42 = arith.constant 0 : index
    %c0_43 = arith.constant 0 : index
    %152 = vector.load %arg6[%c1, %c0_42, %c0_43] : memref<2x64x3xbf16, #tpu.memory_space<vmem>>, vector<1x64x3xbf16>
    %153 = vector.shape_cast %152 : vector<1x64x3xbf16> to vector<64x3xbf16>
    %cst_44 = arith.constant dense<0.000000e+00> : vector<8x3xf32>
    %154 = tpu.matmul %151, %153, %cst_44 {dimension_numbers = #tpu.dot_dimension_numbers<[1], [0], [0], [1], [0, 0, 1, 1], [], []>} : vector<8x64xbf16>, vector<64x3xbf16>, vector<8x3xf32> -> vector<8x3xf32>
    %155 = arith.addf %150, %154 : vector<8x3xf32>
    %c0_45 = arith.constant 0 : index
    %c0_46 = arith.constant 0 : index
    %156 = vector.load %arg7[%c0_45, %c0_46] : memref<1x3xf32, #tpu.memory_space<vmem>>, vector<1x3xf32>
    %157 = vector.broadcast %156 : vector<1x3xf32> to vector<8x3xf32>
    %158 = arith.addf %155, %157 : vector<8x3xf32>
    %c0_47 = arith.constant 0 : index
    %c0_48 = arith.constant 0 : index
    %c0_49 = arith.constant 0 : index
    %159 = vector.load %arg8[%c0_47, %c0_48, %c0_49] : memref<1x8x3xf32, #tpu.memory_space<vmem>>, vector<1x8x3xf32>
    %160 = vector.shape_cast %159 : vector<1x8x3xf32> to vector<8x3xf32>
    %161 = vector.shape_cast %158 : vector<8x3xf32> to vector<1x8x3xf32>
    tpu.vector_store %arg8[%c0_47, %c0_48, %c0_49], %161 {strides = array<i32>} : memref<1x8x3xf32, #tpu.memory_space<vmem>>, vector<1x8x3xf32>,
    return
  }
  func.func @transform_0(%arg0: i32) -> (i32, i32, i32) {
    %c0_i32 = arith.constant 0 : i32
    %c0_i32_0 = arith.constant 0 : i32
    %c0_i32_1 = arith.constant 0 : i32
    return %arg0, %c0_i32, %c0_i32_0 : i32, i32, i32
  }
  func.func @transform_1(%arg0: i32) -> (i32, i32) {
    %c0_i32 = arith.constant 0 : i32
    %c0_i32_0 = arith.constant 0 : i32
    %c0_i32_1 = arith.constant 0 : i32
    return %c0_i32, %c0_i32_0 : i32, i32
  }
  func.func @transform_2(%arg0: i32) -> (i32, i32) {
    %c0_i32 = arith.constant 0 : i32
    %c0_i32_0 = arith.constant 0 : i32
    %c0_i32_1 = arith.constant 0 : i32
    return %c0_i32, %c0_i32_0 : i32, i32
  }
  func.func @transform_3(%arg0: i32) -> (i32, i32) {
    %c0_i32 = arith.constant 0 : i32
    %c0_i32_0 = arith.constant 0 : i32
    %c0_i32_1 = arith.constant 0 : i32
    return %c0_i32, %c0_i32_0 : i32, i32
  }
  func.func @transform_4(%arg0: i32) -> (i32, i32) {
    %c0_i32 = arith.constant 0 : i32
    %c0_i32_0 = arith.constant 0 : i32
    %c0_i32_1 = arith.constant 0 : i32
    return %c0_i32, %c0_i32_0 : i32, i32
  }
  func.func @transform_5(%arg0: i32) -> (i32, i32, i32) {
    %c0_i32 = arith.constant 0 : i32
    %c0_i32_0 = arith.constant 0 : i32
    %c0_i32_1 = arith.constant 0 : i32
    %c0_i32_2 = arith.constant 0 : i32
    return %c0_i32, %c0_i32_0, %c0_i32_1 : i32, i32, i32
  }
  func.func @transform_6(%arg0: i32) -> (i32, i32) {
    %c0_i32 = arith.constant 0 : i32
    %c0_i32_0 = arith.constant 0 : i32
    %c0_i32_1 = arith.constant 0 : i32
    return %c0_i32, %c0_i32_0 : i32, i32
  }
  func.func @transform_7(%arg0: i32) -> (i32, i32, i32) {
    %c0_i32 = arith.constant 0 : i32
    %c0_i32_0 = arith.constant 0 : i32
    %c0_i32_1 = arith.constant 0 : i32
    return %arg0, %c0_i32, %c0_i32_0 : i32, i32, i32
  }
}

</mosaic_0001>

<llo_original>
// kernel: conv_bilstm_forward.1
$region0: #{conv_bilstm_forward.1}
  #allocation0 [shape = 'u32[]', space=smem, size = 0x4, offset = 0x4, fixed_abs, tag = 'smem constant byte address 0x4 - core index']
  #allocation1 [shape = 'u32[72,128]{1,0:T(1,128)}', space=vmem, size = 0x9000, scoped, tag = 'internal scratch']
  %s0 = inlined_call_operand.vmem [shape: bf16[1,40,13], index: 0, kind: input, shape index: {}]
  %s1 = inlined_call_operand.vmem [shape: bf16[13,64], index: 1, kind: input, shape index: {}]
  %s2 = inlined_call_operand.vmem [shape: bf16[64,512], index: 2, kind: input, shape index: {}]
  %s3 = inlined_call_operand.vmem [shape: bf16[64,256], index: 3, kind: input, shape index: {}]
  %s4 = inlined_call_operand.vmem [shape: f32[1,512], index: 4, kind: input, shape index: {}]
  %s5 = inlined_call_operand.vmem [shape: bf16[2,64,3], index: 5, kind: input, shape index: {}]
  %s6 = inlined_call_operand.vmem [shape: f32[1,3], index: 6, kind: input, shape index: {}]
  %s7 = inlined_call_operand.vmem [shape: f32[1,8,3], index: 7, kind: output, shape index: {}]
  %s8 = sld [smem:[#allocation0]]
  $region38: #{conv_bilstm_forward.1} parent=0
    _
  %s10 = ssub.s32 1, %s8
  %s11 = scalar_select 0, %s10, %s8
  // Predicated region
  $region2: #{conv_bilstm_forward.1} parent=0 // pred_check
    _
  $region3: #{conv_bilstm_forward.1} parent=0 // pred_check_branch
    %13 = sbr.rel (0) target = $region5
  $region4: #{conv_bilstm_forward.1} parent=0 // pred_region
    _
  $region5: #{conv_bilstm_forward.1} parent=0 // pred_fallthru
    _
  // Predicated region
  $region6: #{conv_bilstm_forward.1} parent=0 // pred_check
    _
  $region7: #{conv_bilstm_forward.1} parent=0 // pred_check_branch
    %15 = sbr.rel (0) target = $region9
  $region8: #{conv_bilstm_forward.1} parent=0 // pred_region
    _
  $region9: #{conv_bilstm_forward.1} parent=0 // pred_fallthru
    _
  // Predicated region
  $region10: #{conv_bilstm_forward.1} parent=0 // pred_check
    _
  $region11: #{conv_bilstm_forward.1} parent=0 // pred_check_branch
    %17 = sbr.rel (0) target = $region13
  $region12: #{conv_bilstm_forward.1} parent=0 // pred_region
    _
  $region13: #{conv_bilstm_forward.1} parent=0 // pred_fallthru
    _
  // Predicated region
  $region14: #{conv_bilstm_forward.1} parent=0 // pred_check
    _
  $region15: #{conv_bilstm_forward.1} parent=0 // pred_check_branch
    %19 = sbr.rel (0) target = $region17
  $region16: #{conv_bilstm_forward.1} parent=0 // pred_region
    _
  $region17: #{conv_bilstm_forward.1} parent=0 // pred_fallthru
    _
  // Predicated region
  $region18: #{conv_bilstm_forward.1} parent=0 // pred_check
    _
  $region19: #{conv_bilstm_forward.1} parent=0 // pred_check_branch
    %21 = sbr.rel (0) target = $region21
  $region20: #{conv_bilstm_forward.1} parent=0 // pred_region
    _
  $region21: #{conv_bilstm_forward.1} parent=0 // pred_fallthru
    _
  // Predicated region
  $region22: #{conv_bilstm_forward.1} parent=0 // pred_check
    _
  $region23: #{conv_bilstm_forward.1} parent=0 // pred_check_branch
    %23 = sbr.rel (0) target = $region25
  $region24: #{conv_bilstm_forward.1} parent=0 // pred_region
    _
  $region25: #{conv_bilstm_forward.1} parent=0 // pred_fallthru
    _
  // Predicated region
  $region26: #{conv_bilstm_forward.1} parent=0 // pred_check
    _
  $region27: #{conv_bilstm_forward.1} parent=0 // pred_check_branch
    %25 = sbr.rel (0) target = $region29
  $region28: #{conv_bilstm_forward.1} parent=0 // pred_region
    _
  $region29: #{conv_bilstm_forward.1} parent=0 // pred_fallthru
    _
  %v27 = vld [vmem:[%s0] sm:$0xf]
  %v28 = vld [vmem:[%s0 + $0x4] sm:$0xf]
  %v29 = vld [vmem:[%s0 + $0x8] sm:$0xf]
  %v30 = vld [vmem:[%s0 + $0xc] sm:$0xf]
  %v31 = vld [vmem:[%s0 + $0x10] sm:$0xf]
  %v32 = vld [vmem:[%s1] sm:$0xf]
  %v33 = vld [vmem:[%s1 + $0x4] sm:$0x7]
  %v39 = vunpack.c.l.b16 %v27
  %v40 = vunpack.c.l.b16 %v28
  %v41 = vunpack.c.l.b16 %v29
  %v42 = vunpack.c.l.b16 %v30
  %v43 = vunpack.c.l.b16 %v31
  %v44 = vpack.c.b16 %v40, %v39
  %v45 = vpack.c.b16 %v42, %v41
  %v46 = vpack.c.b16 %v43, %v43
  %v49 = vunpack.c.l.b16 %v32
  %v50 = vunpack.c.l.b16 %v33
  %v51 = vpack.c.b16 %v50, %v49
  %vm52 = vcmask 105472
  %v54 = vsel %vm52, %v44, 0
  %v57 = vsel %vm52, %v45, 0
  %v60 = vsel %vm52, %v46, 0
  %vm62 = vcmask 1045504
  %vm63 = vcmask 1046528
  %v64 = vsel %vm62, 4294967295, 65535
  %v65 = vsel %vm63, %v64, 0
  %v67 = vand.u32 %v51, %v65
  %69 = vmatpush.bf16.msra.mxu0 0
  %70 = vmatpush.bf16.msra.mxu0 0
  %71 = vmatpush.bf16.msra.mxu0 0
  %72 = vmatpush.bf16.msra.mxu0 0
  %73 = vmatpush.bf16.msra.mxu0 0
  %74 = vmatpush.bf16.msra.mxu0 0
  %75 = vmatpush.bf16.msra.mxu0 0
  %76 = vmatpush.bf16.msra.mxu0 %v67
  %77 = vmatmul.bf16.gmra.mxu0 %v54
  %v78 = vpop.f32.mrf.mxu0
  %v79 = vadd.f32 0.0, %v78
  %v80 = vpop.f32.mrf.mxu0
  %v81 = vadd.f32 0.0, %v80
  %82 = vmatmul.bf16.gmra.mxu0 %v57
  %v83 = vpop.f32.mrf.mxu0
  %v84 = vadd.f32 0.0, %v83
  %v85 = vpop.f32.mrf.mxu0
  %v86 = vadd.f32 0.0, %v85
  %87 = vmatmul.bf16.gmra.mxu0 %v60
  %v88 = vpop.f32.mrf.mxu0
  %v89 = vadd.f32 0.0, %v88
  %v90 = vpop.f32.mrf.mxu0
  %91 = vdwg.mxu0
  %vm92 = vcmp.gt.f32.partialorder %v79, 0.0
  %vm93 = vcmp.gt.f32.partialorder %v81, 0.0
  %vm94 = vcmp.gt.f32.partialorder %v84, 0.0
  %vm95 = vcmp.gt.f32.partialorder %v86, 0.0
  %vm96 = vcmp.gt.f32.partialorder %v89, 0.0
  %v97 = vmin.f32 %v79, 0.0
  %v98 = vmin.f32 %v81, 0.0
  %v99 = vmin.f32 %v84, 0.0
  %v100 = vmin.f32 %v86, 0.0
  %v101 = vmin.f32 %v89, 0.0
  %v102 = vmul.f32 %v97, 1.442695
  %v103 = vpow.pop %v102
  %v104 = vmul.f32 %v98, 1.442695
  %v105 = vpow.pop %v104
  %v106 = vmul.f32 %v99, 1.442695
  %v107 = vpow.pop %v106
  %v108 = vmul.f32 %v100, 1.442695
  %v109 = vpow.pop %v108
  %v110 = vmul.f32 %v101, 1.442695
  %v111 = vpow.pop %v110
  %v112 = vsub.f32 %v103, 1.0
  %v113 = vsub.f32 %v105, 1.0
  %v114 = vsub.f32 %v107, 1.0
  %v115 = vsub.f32 %v109, 1.0
  %v116 = vsub.f32 %v111, 1.0
  %v117 = vsel %vm92, %v79, %v112
  %v118 = vsel %vm93, %v81, %v113
  %v119 = vsel %vm94, %v84, %v114
  %v120 = vsel %vm95, %v86, %v115
  %v121 = vsel %vm96, %v89, %v116
  %v122 = vpack.c.bf16 %v118, %v117
  %v123 = vpack.c.bf16 %v120, %v119
  %v124 = vpack.c.bf16 %v121, %v121
  %v125 = vld [vmem:[%s2] sm:$0xff]
  %v126 = vld [vmem:[%s2 + $0x8] sm:$0xff]
  %v127 = vld [vmem:[%s2 + $0x10] sm:$0xff]
  %v128 = vld [vmem:[%s2 + $0x18] sm:$0xff]
  %v129 = vld [vmem:[%s2 + $0x20] sm:$0xff]
  %v130 = vld [vmem:[%s2 + $0x28] sm:$0xff]
  %v131 = vld [vmem:[%s2 + $0x30] sm:$0xff]
  %v132 = vld [vmem:[%s2 + $0x38] sm:$0xff]
  %v133 = vld [vmem:[%s2 + $0x40] sm:$0xff]
  %v134 = vld [vmem:[%s2 + $0x48] sm:$0xff]
  %v135 = vld [vmem:[%s2 + $0x50] sm:$0xff]
  %v136 = vld [vmem:[%s2 + $0x58] sm:$0xff]
  %v137 = vld [vmem:[%s2 + $0x60] sm:$0xff]
  %v138 = vld [vmem:[%s2 + $0x68] sm:$0xff]
  %v139 = vld [vmem:[%s2 + $0x70] sm:$0xff]
  %v140 = vld [vmem:[%s2 + $0x78] sm:$0xff]
  %v141 = vld [vmem:[%s4] sm:$0xf]
  %v143 = vperm.slane %v141, 0
  %v144 = vperm.slane %v141, 1
  %v145 = vperm.slane %v141, 2
  %v146 = vperm.slane %v141, 3
  %v167 = vunpack.c.l.b16 %v125
  %v168 = vunpack.c.h.b16 %v125
  %v169 = vunpack.c.l.b16 %v126
  %v170 = vunpack.c.h.b16 %v126
  %v171 = vunpack.c.l.b16 %v127
  %v172 = vunpack.c.h.b16 %v127
  %v173 = vunpack.c.l.b16 %v128
  %v174 = vunpack.c.h.b16 %v128
  %v175 = vunpack.c.l.b16 %v129
  %v176 = vunpack.c.h.b16 %v129
  %v177 = vunpack.c.l.b16 %v130
  %v178 = vunpack.c.h.b16 %v130
  %v179 = vunpack.c.l.b16 %v131
  %v180 = vunpack.c.h.b16 %v131
  %v181 = vunpack.c.l.b16 %v132
  %v182 = vunpack.c.h.b16 %v132
  %v183 = vunpack.c.l.b16 %v133
  %v184 = vunpack.c.h.b16 %v133
  %v185 = vunpack.c.l.b16 %v134
  %v186 = vunpack.c.h.b16 %v134
  %v187 = vunpack.c.l.b16 %v135
  %v188 = vunpack.c.h.b16 %v135
  %v189 = vunpack.c.l.b16 %v136
  %v190 = vunpack.c.h.b16 %v136
  %v191 = vunpack.c.l.b16 %v137
  %v192 = vunpack.c.h.b16 %v137
  %v193 = vunpack.c.l.b16 %v138
  %v194 = vunpack.c.h.b16 %v138
  %v195 = vunpack.c.l.b16 %v139
  %v196 = vunpack.c.h.b16 %v139
  %v197 = vunpack.c.l.b16 %v140
  %v198 = vunpack.c.h.b16 %v140
  %v199 = vpack.c.b16 %v171, %v167
  %v200 = vpack.c.b16 %v172, %v168
  %v201 = vpack.c.b16 %v173, %v169
  %v202 = vpack.c.b16 %v174, %v170
  %v203 = vpack.c.b16 %v179, %v175
  %v204 = vpack.c.b16 %v180, %v176
  %v205 = vpack.c.b16 %v181, %v177
  %v206 = vpack.c.b16 %v182, %v178
  %v207 = vpack.c.b16 %v187, %v183
  %v208 = vpack.c.b16 %v188, %v184
  %v209 = vpack.c.b16 %v189, %v185
  %v210 = vpack.c.b16 %v190, %v186
  %v211 = vpack.c.b16 %v195, %v191
  %v212 = vpack.c.b16 %v196, %v192
  %v213 = vpack.c.b16 %v197, %v193
  %v214 = vpack.c.b16 %v198, %v194
  %vm231 = vcmask 523264
  %v233 = vsel %vm231, %v122, 0
  %v236 = vsel %vm231, %v123, 0
  %v239 = vsel %vm231, %v124, 0
  %241 = vmatpush.bf16.msra.mxu0 0
  %242 = vmatpush.bf16.msra.mxu0 0
  %243 = vmatpush.bf16.msra.mxu0 0
  %244 = vmatpush.bf16.msra.mxu0 0
  %245 = vmatpush.bf16.msra.mxu0 %v211
  %246 = vmatpush.bf16.msra.mxu0 %v207
  %247 = vmatpush.bf16.msra.mxu0 %v203
  %248 = vmatpush.bf16.msra.mxu0 %v199
  %249 = vmatmul.bf16.gmra.mxu0 %v233
  %v250 = vpop.f32.mrf.mxu0
  %v251 = vadd.f32 %v143, %v250
  %v252 = vpop.f32.mrf.mxu0
  %v253 = vadd.f32 %v143, %v252
  %254 = vmatmul.bf16.gmra.mxu0 %v236
  %v255 = vpop.f32.mrf.mxu0
  %v256 = vadd.f32 %v143, %v255
  %v257 = vpop.f32.mrf.mxu0
  %v258 = vadd.f32 %v143, %v257
  %259 = vmatmul.bf16.gmra.mxu0 %v239
  %v260 = vpop.f32.mrf.mxu0
  %v261 = vadd.f32 %v143, %v260
  %v262 = vpop.f32.mrf.mxu0
  %263 = vdwg.mxu0
  %264 = vmatpush.bf16.msra.mxu0 0
  %265 = vmatpush.bf16.msra.mxu0 0
  %266 = vmatpush.bf16.msra.mxu0 0
  %267 = vmatpush.bf16.msra.mxu0 0
  %268 = vmatpush.bf16.msra.mxu0 %v212
  %269 = vmatpush.bf16.msra.mxu0 %v208
  %270 = vmatpush.bf16.msra.mxu0 %v204
  %271 = vmatpush.bf16.msra.mxu0 %v200
  %272 = vmatmul.bf16.gmra.mxu0 %v233
  %v273 = vpop.f32.mrf.mxu0
  %v274 = vadd.f32 %v144, %v273
  %v275 = vpop.f32.mrf.mxu0
  %v276 = vadd.f32 %v144, %v275
  %277 = vmatmul.bf16.gmra.mxu0 %v236
  %v278 = vpop.f32.mrf.mxu0
  %v279 = vadd.f32 %v144, %v278
  %v280 = vpop.f32.mrf.mxu0
  %v281 = vadd.f32 %v144, %v280
  %282 = vmatmul.bf16.gmra.mxu0 %v239
  %v283 = vpop.f32.mrf.mxu0
  %v284 = vadd.f32 %v144, %v283
  %v285 = vpop.f32.mrf.mxu0
  %286 = vdwg.mxu0
  %287 = vmatpush.bf16.msra.mxu0 0
  %288 = vmatpush.bf16.msra.mxu0 0
  %289 = vmatpush.bf16.msra.mxu0 0
  %290 = vmatpush.bf16.msra.mxu0 0
  %291 = vmatpush.bf16.msra.mxu0 %v213
  %292 = vmatpush.bf16.msra.mxu0 %v209
  %293 = vmatpush.bf16.msra.mxu0 %v205
  %294 = vmatpush.bf16.msra.mxu0 %v201
  %295 = vmatmul.bf16.gmra.mxu0 %v233
  %v296 = vpop.f32.mrf.mxu0
  %v297 = vpop.f32.mrf.mxu0
  %298 = vmatmul.bf16.gmra.mxu0 %v236
  %v299 = vpop.f32.mrf.mxu0
  %v300 = vpop.f32.mrf.mxu0
  %301 = vmatmul.bf16.gmra.mxu0 %v239
  %v302 = vpop.f32.mrf.mxu0
  %v303 = vadd.f32 %v145, %v302
  %v304 = vpop.f32.mrf.mxu0
  %305 = vdwg.mxu0
  %306 = vmatpush.bf16.msra.mxu0 0
  %307 = vmatpush.bf16.msra.mxu0 0
  %308 = vmatpush.bf16.msra.mxu0 0
  %309 = vmatpush.bf16.msra.mxu0 0
  %310 = vmatpush.bf16.msra.mxu0 %v214
  %311 = vmatpush.bf16.msra.mxu0 %v210
  %312 = vmatpush.bf16.msra.mxu0 %v206
  %313 = vmatpush.bf16.msra.mxu0 %v202
  %314 = vmatmul.bf16.gmra.mxu0 %v233
  %v315 = vpop.f32.mrf.mxu0
  %v316 = vpop.f32.mrf.mxu0
  %317 = vmatmul.bf16.gmra.mxu0 %v236
  %v318 = vpop.f32.mrf.mxu0
  %v319 = vpop.f32.mrf.mxu0
  %320 = vmatmul.bf16.gmra.mxu0 %v239
  %v321 = vpop.f32.mrf.mxu0
  %v322 = vadd.f32 %v146, %v321
  %v323 = vpop.f32.mrf.mxu0
  %324 = vdwg.mxu0
  %v325 = vld [vmem:[%s3] sm:$0xff]
  %v326 = vld [vmem:[%s3 + $0x8] sm:$0xff]
  %v327 = vld [vmem:[%s3 + $0x10] sm:$0xff]
  %v328 = vld [vmem:[%s3 + $0x18] sm:$0xff]
  %v329 = vld [vmem:[%s3 + $0x20] sm:$0xff]
  %v330 = vld [vmem:[%s3 + $0x28] sm:$0xff]
  %v331 = vld [vmem:[%s3 + $0x30] sm:$0xff]
  %v332 = vld [vmem:[%s3 + $0x38] sm:$0xff]
  %v333 = vmul.f32 %v251, 0.5
  %v334 = vmul.f32 %v274, 0.5
  %v335 = vtanh.pop %v333
  %v336 = vtanh.pop %v334
  %v337 = vmul.f32 %v335, 0.5
  %v338 = vmul.f32 %v336, 0.5
  %v339 = vadd.f32 %v337, 0.5
  %v340 = vadd.f32 %v338, 0.5
  %v341 = vtanh.pop %v274
  %v342 = vmul.f32 %v339, 0.0
  %344 = vrot.lane.b32.xlu0 %v341, 64
  %v345 = vpop.permute.xlu0 %344
  %v347 = vmul.f32 %v339, %v345
  %349 = vrot.lane.b32.xlu0 %v347, 64
  %v350 = vpop.permute.xlu0 %349
  %v352 = vadd.f32 %v342, %v350
  %v353 = vtanh.pop %v352
  %355 = vrot.lane.b32.xlu0 %v353, 64
  %v356 = vpop.permute.xlu0 %355
  %v358 = vmul.f32 %v340, %v356
  %v359 = vpack.c.bf16 %v358, %v358
  %v368 = vunpack.c.l.b16 %v325
  %v369 = vunpack.c.h.b16 %v325
  %v370 = vunpack.c.l.b16 %v326
  %v371 = vunpack.c.h.b16 %v326
  %v372 = vunpack.c.l.b16 %v327
  %v373 = vunpack.c.h.b16 %v327
  %v374 = vunpack.c.l.b16 %v328
  %v375 = vunpack.c.h.b16 %v328
  %v376 = vunpack.c.l.b16 %v329
  %v377 = vunpack.c.h.b16 %v329
  %v378 = vunpack.c.l.b16 %v330
  %v379 = vunpack.c.h.b16 %v330
  %v380 = vunpack.c.l.b16 %v331
  %v381 = vunpack.c.h.b16 %v331
  %v382 = vunpack.c.l.b16 %v332
  %v383 = vunpack.c.h.b16 %v332
  %v384 = vpack.c.b16 %v370, %v368
  %v385 = vpack.c.b16 %v371, %v369
  %v386 = vpack.c.b16 %v374, %v372
  %v387 = vpack.c.b16 %v375, %v373
  %v388 = vpack.c.b16 %v378, %v376
  %v389 = vpack.c.b16 %v379, %v377
  %v390 = vpack.c.b16 %v382, %v380
  %v391 = vpack.c.b16 %v383, %v381
  %v401 = vsel %vm231, %v359, 0
  %403 = vmatpush.bf16.msra.mxu0 0
  %404 = vmatpush.bf16.msra.mxu0 0
  %405 = vmatpush.bf16.msra.mxu0 0
  %406 = vmatpush.bf16.msra.mxu0 0
  %407 = vmatpush.bf16.msra.mxu0 %v390
  %408 = vmatpush.bf16.msra.mxu0 %v388
  %409 = vmatpush.bf16.msra.mxu0 %v386
  %410 = vmatpush.bf16.msra.mxu0 %v384
  %411 = vmatmul.bf16.gmra.mxu0 %v401
  %v412 = vpop.f32.mrf.mxu0
  %v413 = vadd.f32 0.0, %v412
  %v414 = vpop.f32.mrf.mxu0
  %415 = vdwg.mxu0
  %416 = vmatpush.bf16.msra.mxu0 0
  %417 = vmatpush.bf16.msra.mxu0 0
  %418 = vmatpush.bf16.msra.mxu0 0
  %419 = vmatpush.bf16.msra.mxu0 0
  %420 = vmatpush.bf16.msra.mxu0 %v391
  %421 = vmatpush.bf16.msra.mxu0 %v389
  %422 = vmatpush.bf16.msra.mxu0 %v387
  %423 = vmatpush.bf16.msra.mxu0 %v385
  %424 = vmatmul.bf16.gmra.mxu0 %v401
  %v425 = vpop.f32.mrf.mxu0
  %v426 = vadd.f32 0.0, %v425
  %v427 = vpop.f32.mrf.mxu0
  %428 = vdwg.mxu0
  %v429 = vadd.f32 %v253, %v413
  %v430 = vadd.f32 %v276, %v426
  %v431 = vmul.f32 %v429, 0.5
  %v432 = vmul.f32 %v430, 0.5
  %v433 = vtanh.pop %v431
  %v434 = vtanh.pop %v432
  %v435 = vmul.f32 %v433, 0.5
  %v436 = vmul.f32 %v434, 0.5
  %v437 = vadd.f32 %v435, 0.5
  %v438 = vadd.f32 %v436, 0.5
  %v439 = vtanh.pop %v430
  %v440 = vmul.f32 %v437, %v352
  %442 = vrot.lane.b32.xlu0 %v439, 64
  %v443 = vpop.permute.xlu0 %442
  %v445 = vmul.f32 %v437, %v443
  %447 = vrot.lane.b32.xlu0 %v445, 64
  %v448 = vpop.permute.xlu0 %447
  %v450 = vadd.f32 %v440, %v448
  %v451 = vtanh.pop %v450
  %453 = vrot.lane.b32.xlu0 %v451, 64
  %v454 = vpop.permute.xlu0 %453
  %v456 = vmul.f32 %v438, %v454
  %v457 = vpack.c.bf16 %v456, %v456
  %v459 = vsel %vm231, %v457, 0
  %461 = vmatpush.bf16.msra.mxu0 0
  %462 = vmatpush.bf16.msra.mxu0 0
  %463 = vmatpush.bf16.msra.mxu0 0
  %464 = vmatpush.bf16.msra.mxu0 0
  %465 = vmatpush.bf16.msra.mxu0 %v390
  %466 = vmatpush.bf16.msra.mxu0 %v388
  %467 = vmatpush.bf16.msra.mxu0 %v386
  %468 = vmatpush.bf16.msra.mxu0 %v384
  %469 = vmatmul.bf16.gmra.mxu0 %v459
  %v470 = vpop.f32.mrf.mxu0
  %v471 = vadd.f32 0.0, %v470
  %v472 = vpop.f32.mrf.mxu0
  %473 = vdwg.mxu0
  %474 = vmatpush.bf16.msra.mxu0 0
  %475 = vmatpush.bf16.msra.mxu0 0
  %476 = vmatpush.bf16.msra.mxu0 0
  %477 = vmatpush.bf16.msra.mxu0 0
  %478 = vmatpush.bf16.msra.mxu0 %v391
  %479 = vmatpush.bf16.msra.mxu0 %v389
  %480 = vmatpush.bf16.msra.mxu0 %v387
  %481 = vmatpush.bf16.msra.mxu0 %v385
  %482 = vmatmul.bf16.gmra.mxu0 %v459
  %v483 = vpop.f32.mrf.mxu0
  %v484 = vadd.f32 0.0, %v483
  %v485 = vpop.f32.mrf.mxu0
  %486 = vdwg.mxu0
  %v487 = vadd.f32 %v256, %v471
  %v488 = vadd.f32 %v279, %v484
  %v489 = vmul.f32 %v487, 0.5
  %v490 = vmul.f32 %v488, 0.5
  %v491 = vtanh.pop %v489
  %v492 = vtanh.pop %v490
  %v493 = vmul.f32 %v491, 0.5
  %v494 = vmul.f32 %v492, 0.5
  %v495 = vadd.f32 %v493, 0.5
  %v496 = vadd.f32 %v494, 0.5
  %v497 = vtanh.pop %v488
  %v498 = vmul.f32 %v495, %v450
  %500 = vrot.lane.b32.xlu0 %v497, 64
  %v501 = vpop.permute.xlu0 %500
  %v503 = vmul.f32 %v495, %v501
  %505 = vrot.lane.b32.xlu0 %v503, 64
  %v506 = vpop.permute.xlu0 %505
  %v508 = vadd.f32 %v498, %v506
  %v509 = vtanh.pop %v508
  %511 = vrot.lane.b32.xlu0 %v509, 64
  %v512 = vpop.permute.xlu0 %511
  %v514 = vmul.f32 %v496, %v512
  %v515 = vpack.c.bf16 %v514, %v514
  %v517 = vsel %vm231, %v515, 0
  %519 = vmatpush.bf16.msra.mxu0 0
  %520 = vmatpush.bf16.msra.mxu0 0
  %521 = vmatpush.bf16.msra.mxu0 0
  %522 = vmatpush.bf16.msra.mxu0 0
  %523 = vmatpush.bf16.msra.mxu0 %v390
  %524 = vmatpush.bf16.msra.mxu0 %v388
  %525 = vmatpush.bf16.msra.mxu0 %v386
  %526 = vmatpush.bf16.msra.mxu0 %v384
  %527 = vmatmul.bf16.gmra.mxu0 %v517
  %v528 = vpop.f32.mrf.mxu0
  %v529 = vadd.f32 0.0, %v528
  %v530 = vpop.f32.mrf.mxu0
  %531 = vdwg.mxu0
  %532 = vmatpush.bf16.msra.mxu0 0
  %533 = vmatpush.bf16.msra.mxu0 0
  %534 = vmatpush.bf16.msra.mxu0 0
  %535 = vmatpush.bf16.msra.mxu0 0
  %536 = vmatpush.bf16.msra.mxu0 %v391
  %537 = vmatpush.bf16.msra.mxu0 %v389
  %538 = vmatpush.bf16.msra.mxu0 %v387
  %539 = vmatpush.bf16.msra.mxu0 %v385
  %540 = vmatmul.bf16.gmra.mxu0 %v517
  %v541 = vpop.f32.mrf.mxu0
  %v542 = vadd.f32 0.0, %v541
  %v543 = vpop.f32.mrf.mxu0
  %544 = vdwg.mxu0
  %v545 = vadd.f32 %v258, %v529
  %v546 = vadd.f32 %v281, %v542
  %v547 = vmul.f32 %v545, 0.5
  %v548 = vmul.f32 %v546, 0.5
  %v549 = vtanh.pop %v547
  %v550 = vtanh.pop %v548
  %v551 = vmul.f32 %v549, 0.5
  %v552 = vmul.f32 %v550, 0.5
  %v553 = vadd.f32 %v551, 0.5
  %v554 = vadd.f32 %v552, 0.5
  %v555 = vtanh.pop %v546
  %v556 = vmul.f32 %v553, %v508
  %558 = vrot.lane.b32.xlu0 %v555, 64
  %v559 = vpop.permute.xlu0 %558
  %v561 = vmul.f32 %v553, %v559
  %563 = vrot.lane.b32.xlu0 %v561, 64
  %v564 = vpop.permute.xlu0 %563
  %v566 = vadd.f32 %v556, %v564
  %v567 = vtanh.pop %v566
  %569 = vrot.lane.b32.xlu0 %v567, 64
  %v570 = vpop.permute.xlu0 %569
  %v572 = vmul.f32 %v554, %v570
  %v573 = vpack.c.bf16 %v572, %v572
  %v575 = vsel %vm231, %v573, 0
  %577 = vmatpush.bf16.msra.mxu0 0
  %578 = vmatpush.bf16.msra.mxu0 0
  %579 = vmatpush.bf16.msra.mxu0 0
  %580 = vmatpush.bf16.msra.mxu0 0
  %581 = vmatpush.bf16.msra.mxu0 %v390
  %582 = vmatpush.bf16.msra.mxu0 %v388
  %583 = vmatpush.bf16.msra.mxu0 %v386
  %584 = vmatpush.bf16.msra.mxu0 %v384
  %585 = vmatmul.bf16.gmra.mxu0 %v575
  %v586 = vpop.f32.mrf.mxu0
  %v587 = vadd.f32 0.0, %v586
  %v588 = vpop.f32.mrf.mxu0
  %589 = vdwg.mxu0
  %590 = vmatpush.bf16.msra.mxu0 0
  %591 = vmatpush.bf16.msra.mxu0 0
  %592 = vmatpush.bf16.msra.mxu0 0
  %593 = vmatpush.bf16.msra.mxu0 0
  %594 = vmatpush.bf16.msra.mxu0 %v391
  %595 = vmatpush.bf16.msra.mxu0 %v389
  %596 = vmatpush.bf16.msra.mxu0 %v387
  %597 = vmatpush.bf16.msra.mxu0 %v385
  %598 = vmatmul.bf16.gmra.mxu0 %v575
  %v599 = vpop.f32.mrf.mxu0
  %v600 = vadd.f32 0.0, %v599
  %v601 = vpop.f32.mrf.mxu0
  %602 = vdwg.mxu0
  %v603 = vadd.f32 %v261, %v587
  %v604 = vadd.f32 %v284, %v600
  %v605 = vmul.f32 %v603, 0.5
  %v606 = vmul.f32 %v604, 0.5
  %v607 = vtanh.pop %v605
  %v608 = vtanh.pop %v606
  %v609 = vmul.f32 %v607, 0.5
  %v610 = vmul.f32 %v608, 0.5
  %v611 = vadd.f32 %v609, 0.5
  %v612 = vadd.f32 %v610, 0.5
  %v613 = vtanh.pop %v604
  %v614 = vmul.f32 %v611, %v566
  %616 = vrot.lane.b32.xlu0 %v613, 64
  %v617 = vpop.permute.xlu0 %616
  %v619 = vmul.f32 %v611, %v617
  %621 = vrot.lane.b32.xlu0 %v619, 64
  %v622 = vpop.permute.xlu0 %621
  %v624 = vadd.f32 %v614, %v622
  %v625 = vtanh.pop %v624
  %627 = vrot.lane.b32.xlu0 %v625, 64
  %v628 = vpop.permute.xlu0 %627
  %v630 = vmul.f32 %v612, %v628
  %v631 = vmul.f32 %v303, 0.5
  %v632 = vmul.f32 %v322, 0.5
  %v633 = vtanh.pop %v631
  %v634 = vtanh.pop %v632
  %v635 = vmul.f32 %v633, 0.5
  %v636 = vmul.f32 %v634, 0.5
  %v637 = vadd.f32 %v635, 0.5
  %v638 = vadd.f32 %v636, 0.5
  %v639 = vtanh.pop %v322
  %v640 = vmul.f32 %v637, 0.0
  %642 = vrot.lane.b32.xlu0 %v639, 64
  %v643 = vpop.permute.xlu0 %642
  %v645 = vmul.f32 %v637, %v643
  %647 = vrot.lane.b32.xlu0 %v645, 64
  %v648 = vpop.permute.xlu0 %647
  %v650 = vadd.f32 %v640, %v648
  %v651 = vtanh.pop %v650
  %653 = vrot.lane.b32.xlu0 %v651, 64
  %v654 = vpop.permute.xlu0 %653
  %v656 = vmul.f32 %v638, %v654
  %v657 = vpack.c.bf16 %v630, %v630
  %v658 = vld [vmem:[%s5] sm:$0xf]
  %v659 = vld [vmem:[%s5 + $0x4] sm:$0xf]
  %v660 = vld [vmem:[%s5 + $0x8] sm:$0xf]
  %v661 = vld [vmem:[%s5 + $0xc] sm:$0xf]
  %v662 = vld [vmem:[%s5 + $0x10] sm:$0xf]
  %v663 = vld [vmem:[%s5 + $0x14] sm:$0xf]
  %v664 = vld [vmem:[%s5 + $0x18] sm:$0xf]
  %v665 = vld [vmem:[%s5 + $0x1c] sm:$0xf]
  %v666 = vpack.c.bf16 %v656, %v656
  %s667 = scalar_lea.vmem %s5, 32
  %v668 = vld [vmem:[%s667] sm:$0xf]
  %v669 = vld [vmem:[%s667 + $0x4] sm:$0xf]
  %v670 = vld [vmem:[%s667 + $0x8] sm:$0xf]
  %v671 = vld [vmem:[%s667 + $0xc] sm:$0xf]
  %v672 = vld [vmem:[%s667 + $0x10] sm:$0xf]
  %v673 = vld [vmem:[%s667 + $0x14] sm:$0xf]
  %v674 = vld [vmem:[%s667 + $0x18] sm:$0xf]
  %v675 = vld [vmem:[%s667 + $0x1c] sm:$0xf]
  %v684 = vunpack.c.l.b16 %v668
  %v685 = vunpack.c.l.b16 %v669
  %v686 = vunpack.c.l.b16 %v670
  %v687 = vunpack.c.l.b16 %v671
  %v688 = vunpack.c.l.b16 %v672
  %v689 = vunpack.c.l.b16 %v673
  %v690 = vunpack.c.l.b16 %v674
  %v691 = vunpack.c.l.b16 %v675
  %v692 = vpack.c.b16 %v685, %v684
  %v693 = vpack.c.b16 %v687, %v686
  %v694 = vpack.c.b16 %v689, %v688
  %v695 = vpack.c.b16 %v691, %v690
  %v701 = vsel %vm231, %v666, 0
  %703 = vmatpush.bf16.msra.mxu0 0
  %704 = vmatpush.bf16.msra.mxu0 0
  %705 = vmatpush.bf16.msra.mxu0 0
  %706 = vmatpush.bf16.msra.mxu0 0
  %707 = vmatpush.bf16.msra.mxu0 %v695
  %708 = vmatpush.bf16.msra.mxu0 %v694
  %709 = vmatpush.bf16.msra.mxu0 %v693
  %710 = vmatpush.bf16.msra.mxu0 %v692
  %711 = vmatmul.bf16.gmra.mxu0 %v701
  %v712 = vpop.f32.mrf.mxu0
  %v713 = vadd.f32 0.0, %v712
  %v714 = vpop.f32.mrf.mxu0
  %715 = vdwg.mxu0
  %v724 = vunpack.c.l.b16 %v658
  %v725 = vunpack.c.l.b16 %v659
  %v726 = vunpack.c.l.b16 %v660
  %v727 = vunpack.c.l.b16 %v661
  %v728 = vunpack.c.l.b16 %v662
  %v729 = vunpack.c.l.b16 %v663
  %v730 = vunpack.c.l.b16 %v664
  %v731 = vunpack.c.l.b16 %v665
  %v732 = vpack.c.b16 %v725, %v724
  %v733 = vpack.c.b16 %v727, %v726
  %v734 = vpack.c.b16 %v729, %v728
  %v735 = vpack.c.b16 %v731, %v730
  %v741 = vsel %vm231, %v657, 0
  %743 = vmatpush.bf16.msra.mxu0 0
  %744 = vmatpush.bf16.msra.mxu0 0
  %745 = vmatpush.bf16.msra.mxu0 0
  %746 = vmatpush.bf16.msra.mxu0 0
  %747 = vmatpush.bf16.msra.mxu0 %v735
  %748 = vmatpush.bf16.msra.mxu0 %v734
  %749 = vmatpush.bf16.msra.mxu0 %v733
  %750 = vmatpush.bf16.msra.mxu0 %v732
  %751 = vmatmul.bf16.gmra.mxu0 %v741
  %v752 = vpop.f32.mrf.mxu0
  %v753 = vadd.f32 %v713, %v752
  %v754 = vpop.f32.mrf.mxu0
  %755 = vdwg.mxu0
  %v756 = vld [vmem:[%s6] sm:$0x1]
  %v758 = vperm.slane %v756, 0
  %v760 = vadd.f32 %v753, %v758
  %vm761 = vcmask 23552
  %762 = vst.msk [vmem:[%s7] sm:$0xff] %vm761, %v760
  // Predicated region
  $region30: #{conv_bilstm_forward.1} parent=0 // pred_check
    _
  $region31: #{conv_bilstm_forward.1} parent=0 // pred_check_branch
    %764 = sbr.rel (0) target = $region33
  $region32: #{conv_bilstm_forward.1} parent=0 // pred_region
    _
  $region33: #{conv_bilstm_forward.1} parent=0 // pred_fallthru
    _
  // Predicated region
  $region34: #{conv_bilstm_forward.1} parent=0 // pred_check
    _
  $region35: #{conv_bilstm_forward.1} parent=0 // pred_check_branch
    %766 = sbr.rel (0) target = $region37
  $region36: #{conv_bilstm_forward.1} parent=0 // pred_region
    _
  $region37: #{conv_bilstm_forward.1} parent=0 // pred_fallthru
    _

</llo_original>
